<compile_context>
chip_gen: v5e
topology: v5e:2x2
jax: 0.10.0
libtpu: 0.0.40
codegen_flags: <defaults>
</compile_context>

<pallas_src>
import functools
import numpy as np
import jax
import jax.numpy as jnp
from jax.experimental import pallas as pl
from jax.experimental.pallas import tpu as pltpu


# Per-buffer tile budgets (bytes). Stats streams one full-width array (2 buffers),
# affine streams in + out (4 buffers) -> both land around a 12 MiB footprint.
_STATS_TILE_BYTES = 6 << 20
_AFFINE_TILE_BYTES = 3 << 20


# --------------------------------------------------------------------------
# Kernels
# --------------------------------------------------------------------------
def _stats_kernel(x_ref, mean_ref, std_ref, mean_sc, m2_sc, *, eps, hw, lane_tile):
    """Per-row (b,c) mean and unbiased std over H*W, accumulated across lane blocks.

    Each lane block contributes a centered (mean_b, M2_b); blocks are combined
    with Chan's parallel-variance formula, which avoids the catastrophic
    cancellation of the naive sum / sum-of-squares estimator.
    """
    j = pl.program_id(1)
    n_lane_blocks = pl.num_programs(1)

    @pl.when(j == 0)
    def _init():
        mean_sc[...] = jnp.zeros_like(mean_sc)
        m2_sc[...] = jnp.zeros_like(m2_sc)

    x = x_ref[...].astype(jnp.float32)

    # Mask out lanes past the true H*W in the (possibly partial) last block.
    start = j * lane_tile
    rem = hw - start                                      # int32 scalar (traced)
    lane_ids = jax.lax.broadcasted_iota(jnp.int32, x.shape, 1)
    valid = lane_ids < rem
    n_b = jnp.minimum(rem, lane_tile).astype(jnp.float32)  # lanes in this block

    xv = jnp.where(valid, x, 0.0)
    s_b = jnp.sum(xv, axis=-1, keepdims=True)
    mean_b = s_b / n_b
    d = jnp.where(valid, x - mean_b, 0.0)
    m2_b = jnp.sum(d * d, axis=-1, keepdims=True)

    # Chan combine with the running (mean, M2). Only the last block can be
    # partial, so the running count is exactly j * lane_tile.
    n_a = (j * lane_tile).astype(jnp.float32)
    n = n_a + n_b
    w = n_b / n                                            # n >= n_b >= 1
    delta = mean_b - mean_sc[...]
    mean_sc[...] = mean_sc[...] + delta * w
    m2_sc[...] = m2_sc[...] + m2_b + delta * delta * n_a * w

    @pl.when(j == n_lane_blocks - 1)
    def _finalize():
        # torch .var(dim=2) is unbiased (ddof=1). For H*W == 1 torch yields
        # inf/NaN; the max(., 1) guard makes it finite here instead (documented
        # semantic difference for a degenerate input).
        denom = 1.0 / max(float(hw) - 1.0, 1.0)
        mean_ref[...] = mean_sc[...]
        std_ref[...] = jnp.sqrt(m2_sc[...] * denom + eps)


def _affine_kernel(x_ref, sb_ref, o_ref):
    """out = x * scale + bias; scale/bias are packed as the two columns of sb."""
    x = x_ref[...].astype(jnp.float32)
    sb = sb_ref[...]
    scale = sb[:, 0:1]
    bias = sb[:, 1:2]
    o_ref[...] = (x * scale + bias).astype(o_ref.dtype)


# --------------------------------------------------------------------------
# Tiling policy
# --------------------------------------------------------------------------
def _pick_tiles(bc, hw, itemsize, *, tile_budget_bytes, min_row_blocks=4):
    """Pick (row_tile, lane_tile) for a (bc, hw) array.

    lane_tile is the full hw when an aligned-row strip fits the budget (no pad
    needed for unaligned hw), otherwise a multiple of 128 from the budget.
    row_tile is a multiple of the sublane alignment (or the full bc), clamped so
    the parallel row axis gets >= min_row_blocks blocks when bc allows it.
    """
    row_align = {1: 32, 2: 16}.get(itemsize, 8)

    if hw <= 128 or hw * row_align * itemsize <= tile_budget_bytes:
        lane_tile = hw
    else:
        lane_tile = max(128, (tile_budget_bytes // (row_align * itemsize) // 128) * 128)
        # here lane_tile < hw by construction, and it is a multiple of 128.

    max_rows = max(row_align, tile_budget_bytes // max(lane_tile * itemsize, 1))
    row_tile = min(bc, max_rows)
    if bc >= min_row_blocks * row_align:
        row_tile = min(row_tile, -(-bc // min_row_blocks))  # cdiv(bc, min_row_blocks)

    if bc <= row_align or row_tile >= bc:
        row_tile = bc                                        # full dim is always legal
    else:
        row_tile = max(row_align, (row_tile // row_align) * row_align)
    return row_tile, lane_tile


# --------------------------------------------------------------------------
# pallas_call wrappers
# --------------------------------------------------------------------------
def _row_stats(x2, eps):
    BC, HW = x2.shape
    itemsize = jnp.dtype(x2.dtype).itemsize
    row_tile, lane_tile = _pick_tiles(BC, HW, itemsize,
                                      tile_budget_bytes=_STATS_TILE_BYTES)
    grid = (pl.cdiv(BC, row_tile), pl.cdiv(HW, lane_tile))
    kernel = functools.partial(_stats_kernel, eps=float(eps), hw=HW,
                               lane_tile=lane_tile)
    return pl.pallas_call(
        kernel,
        out_shape=(jax.ShapeDtypeStruct((BC, 1), jnp.float32),
                   jax.ShapeDtypeStruct((BC, 1), jnp.float32)),
        grid=grid,
        in_specs=[pl.BlockSpec((row_tile, lane_tile), lambda i, j: (i, j))],
        out_specs=(pl.BlockSpec((row_tile, 1), lambda i, j: (i, 0)),
                   pl.BlockSpec((row_tile, 1), lambda i, j: (i, 0))),
        scratch_shapes=[pltpu.VMEM((row_tile, 1), jnp.float32),
                        pltpu.VMEM((row_tile, 1), jnp.float32)],
        compiler_params=pltpu.CompilerParams(
            dimension_semantics=("parallel", "arbitrary")),
        cost_estimate=pl.CostEstimate(
            flops=5 * BC * HW, transcendentals=BC,
            bytes_accessed=BC * HW * itemsize + 8 * BC),
    )(x2)


def _apply_affine(x2, sb):
    BC, HW = x2.shape
    itemsize = jnp.dtype(x2.dtype).itemsize
    row_tile, lane_tile = _pick_tiles(BC, HW, itemsize,
                                      tile_budget_bytes=_AFFINE_TILE_BYTES)
    grid = (pl.cdiv(BC, row_tile), pl.cdiv(HW, lane_tile))
    return pl.pallas_call(
        _affine_kernel,
        out_shape=jax.ShapeDtypeStruct((BC, HW), x2.dtype),
        grid=grid,
        in_specs=[pl.BlockSpec((row_tile, lane_tile), lambda i, j: (i, j)),
                  pl.BlockSpec((row_tile, 2), lambda i, j: (i, 0))],
        out_specs=pl.BlockSpec((row_tile, lane_tile), lambda i, j: (i, j)),
        compiler_params=pltpu.CompilerParams(
            dimension_semantics=("parallel", "parallel")),
        cost_estimate=pl.CostEstimate(
            flops=2 * BC * HW, transcendentals=0,
            bytes_accessed=2 * BC * HW * itemsize + 16 * BC),
    )(x2, sb)


# --------------------------------------------------------------------------
# Adain2d forward (jitted: stats kernel -> tiny glue -> affine kernel)
# --------------------------------------------------------------------------
@functools.partial(jax.jit, static_argnames=("eps", "alpha1", "alpha2"))
def adain2d_pallas(x, in_idx, out_idx, *, eps=1e-5, alpha1=0.0, alpha2=0.0):
    """Adain2d forward where the style sources are rows of `x` itself:
    In_style[b] = x[in_idx[b]], Out_style[b] = x[out_idx[b]].
    Style statistics are gathers of x's own per-(b,c) stats, so the full style
    tensors are never materialized or streamed."""
    b, c, h, w = x.shape
    BC, HW = b * c, h * w
    x2 = x.reshape(BC, HW)                      # metadata-only reshape, no copy

    # pass 1: per-(b,c) mean / unbiased std (one read of content)
    mean, std = _row_stats(x2, eps)             # (BC,1) f32 each
    mean = mean.reshape(b, c)
    std = std.reshape(b, c)

    # tiny glue (fused under jit): gather style stats, fold AdaIN into scale/bias
    i_mean, i_std = mean[in_idx], std[in_idx]
    o_mean, o_std = mean[out_idx], std[out_idx]
    w0 = 1.0 - alpha1 - alpha2
    comb_std = w0 * std + alpha1 * i_std + alpha2 * o_std
    comb_mean = w0 * mean + alpha1 * i_mean + alpha2 * o_mean
    ratio = comb_std / std
    scale = ratio.reshape(BC, 1)
    bias = (comb_mean - mean * ratio).reshape(BC, 1)
    sb = jnp.concatenate([scale, bias], axis=1).astype(jnp.float32)   # (BC, 2)

    # pass 2: out = x*scale + bias (one read + one write of content)
    out2 = _apply_affine(x2, sb)
    return out2.reshape(b, c, h, w)


# --------------------------------------------------------------------------
# StyleBlock forward (host-side random style-source selection + Adain2d kernel)
# --------------------------------------------------------------------------
def _select_style_indices(labels_np, rng):
    """Reproduces StyleBlock's per-label random selection (torch.randint high=len-1)."""
    b = labels_np.shape[0]
    in_idx = np.zeros(b, dtype=np.int32)
    out_idx = np.zeros(b, dtype=np.int32)
    for label in np.unique(labels_np):
        inclass = np.where(labels_np == label)[0]
        outclass = np.where(labels_np != label)[0]
        idx = int(rng.integers(0, len(inclass) - 1)) if len(inclass) > 1 else 0
        in_idx[inclass] = inclass[idx]
        if len(outclass) == 0:
            raise ValueError("StyleBlock: all samples share one label; "
                             "Outclass style selection is undefined.")
        oidx = int(rng.integers(0, max(len(outclass) - 1, 1)))
        out_idx[inclass] = outclass[oidx]
    return in_idx, out_idx


def style_block_forward(content, labels, *, alpha1, alpha2,
                        style_type="Inclass_Outclass", seed=0):
    """Reproduces StyleBlock.forward. The data-dependent, per-label random
    style-source selection is host-side glue (mirrors torch.randint semantics);
    the Adain2d math runs in the Pallas kernels above."""
    assert "Inclass" in style_type and "Outclass" in style_type
    labels_np = np.asarray(labels)
    rng = np.random.default_rng(seed)
    in_idx, out_idx = _select_style_indices(labels_np, rng)
    return adain2d_pallas(content, jnp.asarray(in_idx), jnp.asarray(out_idx),
                          eps=1e-5, alpha1=alpha1, alpha2=alpha2)


# --------------------------------------------------------------------------
# Pure-JAX reference (mirrors the PyTorch Adain2d math on gathered style tensors)
# --------------------------------------------------------------------------
def _reference(content, in_style, out_style, eps, a1, a2):
    b, c, h, w = content.shape

    def stats(v):
        v2 = v.reshape(b, c, -1)
        m = v2.mean(axis=2).reshape(b, c, 1, 1)
        var = v2.var(axis=2, ddof=1) + eps
        return m, jnp.sqrt(var).reshape(b, c, 1, 1)

    xm, xs = stats(content)
    im, istd = stats(in_style)
    om, ostd = stats(out_style)
    norm = (content - xm) / xs
    std = (1 - a1 - a2) * xs + a1 * istd + a2 * ostd
    mean = (1 - a1 - a2) * xm + a1 * im + a2 * om
    return norm * std + mean


if __name__ == "__main__":
    key = jax.random.PRNGKey(0)
    b, c, h, w = 4, 8, 16, 16
    content = jax.random.normal(key, (b, c, h, w), dtype=jnp.float32)
    labels = jnp.array([0, 0, 1, 1], dtype=jnp.int32)
    alpha1, alpha2 = 0.3, 0.2

    out = style_block_forward(content, labels, alpha1=alpha1, alpha2=alpha2,
                              style_type="Inclass_Outclass", seed=0)
    out = jax.block_until_ready(out)

    # correctness check against pure-JAX reference with the same style selection
    labels_np = np.asarray(labels)
    rng = np.random.default_rng(0)
    in_idx, out_idx = _select_style_indices(labels_np, rng)
    in_style = jnp.take(content, jnp.asarray(in_idx), axis=0)
    out_style = jnp.take(content, jnp.asarray(out_idx), axis=0)
    ref = _reference(content, in_style, out_style, 1e-5, alpha1, alpha2)

    np.testing.assert_allclose(np.asarray(out), np.asarray(ref), rtol=1e-5, atol=1e-5)
    print("KERNEL_OK")
</pallas_src>

<mosaic_0001>
module attributes {stable_mosaic.version = 11 : i64} {
  func.func @_stats_kernel(%arg0: i32, %arg1: i32, %arg2: memref<8x256xf32, #tpu.memory_space<vmem>>, %arg3: memref<8x1xf32, #tpu.memory_space<vmem>>, %arg4: memref<8x1xf32, #tpu.memory_space<vmem>>, %arg5: memref<8x1xf32, #tpu.memory_space<vmem>>, %arg6: memref<8x1xf32, #tpu.memory_space<vmem>>) attributes {dimension_semantics = [#tpu.dimension_semantics<parallel>, #tpu.dimension_semantics<arbitrary>], iteration_bounds = array<i64: 4, 1>, scalar_prefetch = 0 : i64, scratch_operands = 2 : i64, tpu.core_type = #tpu.core_type<tc>, window_params = [{transform_indices = @transform_0, window_bounds = array<i64: 8, 256>}, {transform_indices = @transform_1, window_bounds = array<i64: 8, 1>}, {transform_indices = @transform_2, window_bounds = array<i64: 8, 1>}]} {
    %c0_i32 = arith.constant 0 : i32
    %0 = arith.cmpi eq, %arg1, %c0_i32 : i32
    %1 = arith.extui %0 : i1 to i32
    %c0_i32_0 = arith.constant 0 : i32
    %2 = arith.cmpi ne, %1, %c0_i32_0 : i32
    scf.if %2 {
      %cst_20 = arith.constant 0.000000e+00 : f32
      %47 = vector.broadcast %cst_20 : f32 to vector<8x1xf32>
      %c0_21 = arith.constant 0 : index
      %c0_22 = arith.constant 0 : index
      %48 = vector.load %arg5[%c0_21, %c0_22] : memref<8x1xf32, #tpu.memory_space<vmem>>, vector<8x1xf32>
      tpu.vector_store %arg5[%c0_21, %c0_22], %47 {strides = array<i32>} : memref<8x1xf32, #tpu.memory_space<vmem>>, vector<8x1xf32>,
      %cst_23 = arith.constant 0.000000e+00 : f32
      %49 = vector.broadcast %cst_23 : f32 to vector<8x1xf32>
      %c0_24 = arith.constant 0 : index
      %c0_25 = arith.constant 0 : index
      %50 = vector.load %arg6[%c0_24, %c0_25] : memref<8x1xf32, #tpu.memory_space<vmem>>, vector<8x1xf32>
      tpu.vector_store %arg6[%c0_24, %c0_25], %49 {strides = array<i32>} : memref<8x1xf32, #tpu.memory_space<vmem>>, vector<8x1xf32>,
    } else {
    }
    %c0 = arith.constant 0 : index
    %c0_1 = arith.constant 0 : index
    %3 = vector.load %arg2[%c0, %c0_1] : memref<8x256xf32, #tpu.memory_space<vmem>>, vector<8x256xf32>
    %c256_i32 = arith.constant 256 : i32
    %4 = arith.muli %arg1, %c256_i32 : i32
    %c256_i32_2 = arith.constant 256 : i32
    %5 = arith.subi %c256_i32_2, %4 : i32
    %6 = tpu.iota {dimensions = array<i32: 1>} : vector<8x256xi32>
    %7 = vector.broadcast %5 : i32 to vector<8x256xi32>
    %8 = arith.cmpi slt, %6, %7 : vector<8x256xi32>
    %c256_i32_3 = arith.constant 256 : i32
    %9 = arith.minsi %5, %c256_i32_3 : i32
    %10 = arith.sitofp %9 : i32 to f32
    %cst = arith.constant 0.000000e+00 : f32
    %11 = vector.broadcast %cst : f32 to vector<8x256xf32>
    %12 = arith.select %8, %3, %11 : vector<8x256xi1>, vector<8x256xf32>
    %cst_4 = arith.constant dense<0.000000e+00> : vector<8xf32>
    %13 = vector.multi_reduction <add>, %12, %cst_4 [1] : vector<8x256xf32> to vector<8xf32>
    %14 = vector.shape_cast %13 : vector<8xf32> to vector<8x1xf32>
    %15 = vector.broadcast %10 : f32 to vector<8x1xf32>
    %16 = arith.divf %14, %15 : vector<8x1xf32>
    %17 = vector.broadcast %16 : vector<8x1xf32> to vector<8x256xf32>
    %18 = arith.subf %3, %17 : vector<8x256xf32>
    %cst_5 = arith.constant 0.000000e+00 : f32
    %19 = vector.broadcast %cst_5 : f32 to vector<8x256xf32>
    %20 = arith.select %8, %18, %19 : vector<8x256xi1>, vector<8x256xf32>
    %21 = arith.mulf %20, %20 : vector<8x256xf32>
    %cst_6 = arith.constant dense<0.000000e+00> : vector<8xf32>
    %22 = vector.multi_reduction <add>, %21, %cst_6 [1] : vector<8x256xf32> to vector<8xf32>
    %23 = vector.shape_cast %22 : vector<8xf32> to vector<8x1xf32>
    %c256_i32_7 = arith.constant 256 : i32
    %24 = arith.muli %arg1, %c256_i32_7 : i32
    %25 = arith.sitofp %24 : i32 to f32
    %26 = arith.addf %25, %10 : f32
    %27 = arith.divf %10, %26 : f32
    %c0_8 = arith.constant 0 : index
    %c0_9 = arith.constant 0 : index
    %28 = vector.load %arg5[%c0_8, %c0_9] : memref<8x1xf32, #tpu.memory_space<vmem>>, vector<8x1xf32>
    %29 = arith.subf %16, %28 : vector<8x1xf32>
    %c0_10 = arith.constant 0 : index
    %c0_11 = arith.constant 0 : index
    %30 = vector.load %arg5[%c0_10, %c0_11] : memref<8x1xf32, #tpu.memory_space<vmem>>, vector<8x1xf32>
    %31 = vector.broadcast %27 : f32 to vector<8x1xf32>
    %32 = arith.mulf %29, %31 : vector<8x1xf32>
    %33 = arith.addf %30, %32 : vector<8x1xf32>
    %c0_12 = arith.constant 0 : index
    %c0_13 = arith.constant 0 : index
    %34 = vector.load %arg5[%c0_12, %c0_13] : memref<8x1xf32, #tpu.memory_space<vmem>>, vector<8x1xf32>
    tpu.vector_store %arg5[%c0_12, %c0_13], %33 {strides = array<i32>} : memref<8x1xf32, #tpu.memory_space<vmem>>, vector<8x1xf32>,
    %c0_14 = arith.constant 0 : index
    %c0_15 = arith.constant 0 : index
    %35 = vector.load %arg6[%c0_14, %c0_15] : memref<8x1xf32, #tpu.memory_space<vmem>>, vector<8x1xf32>
    %36 = arith.addf %35, %23 : vector<8x1xf32>
    %37 = arith.mulf %29, %29 : vector<8x1xf32>
    %38 = vector.broadcast %25 : f32 to vector<8x1xf32>
    %39 = arith.mulf %37, %38 : vector<8x1xf32>
    %40 = vector.broadcast %27 : f32 to vector<8x1xf32>
    %41 = arith.mulf %39, %40 : vector<8x1xf32>
    %42 = arith.addf %36, %41 : vector<8x1xf32>
    %c0_16 = arith.constant 0 : index
    %c0_17 = arith.constant 0 : index
    %43 = vector.load %arg6[%c0_16, %c0_17] : memref<8x1xf32, #tpu.memory_space<vmem>>, vector<8x1xf32>
    tpu.vector_store %arg6[%c0_16, %c0_17], %42 {strides = array<i32>} : memref<8x1xf32, #tpu.memory_space<vmem>>, vector<8x1xf32>,
    %c0_i32_18 = arith.constant 0 : i32
    %44 = arith.cmpi eq, %arg1, %c0_i32_18 : i32
    %45 = arith.extui %44 : i1 to i32
    %c0_i32_19 = arith.constant 0 : i32
    %46 = arith.cmpi ne, %45, %c0_i32_19 : i32
    scf.if %46 {
      %c0_20 = arith.constant 0 : index
      %c0_21 = arith.constant 0 : index
      %47 = vector.load %arg5[%c0_20, %c0_21] : memref<8x1xf32, #tpu.memory_space<vmem>>, vector<8x1xf32>
      %c0_22 = arith.constant 0 : index
      %c0_23 = arith.constant 0 : index
      %48 = vector.load %arg3[%c0_22, %c0_23] : memref<8x1xf32, #tpu.memory_space<vmem>>, vector<8x1xf32>
      tpu.vector_store %arg3[%c0_22, %c0_23], %47 {strides = array<i32>} : memref<8x1xf32, #tpu.memory_space<vmem>>, vector<8x1xf32>,
      %c0_24 = arith.constant 0 : index
      %c0_25 = arith.constant 0 : index
      %49 = vector.load %arg6[%c0_24, %c0_25] : memref<8x1xf32, #tpu.memory_space<vmem>>, vector<8x1xf32>
      %cst_26 = arith.constant 0.00392156886 : f32
      %50 = vector.broadcast %cst_26 : f32 to vector<8x1xf32>
      %51 = arith.mulf %49, %50 : vector<8x1xf32>
      %cst_27 = arith.constant 9.99999974E-6 : f32
      %52 = vector.broadcast %cst_27 : f32 to vector<8x1xf32>
      %53 = arith.addf %51, %52 : vector<8x1xf32>
      %54 = math.sqrt %53 : vector<8x1xf32>
      %c0_28 = arith.constant 0 : index
      %c0_29 = arith.constant 0 : index
      %55 = vector.load %arg4[%c0_28, %c0_29] : memref<8x1xf32, #tpu.memory_space<vmem>>, vector<8x1xf32>
      tpu.vector_store %arg4[%c0_28, %c0_29], %54 {strides = array<i32>} : memref<8x1xf32, #tpu.memory_space<vmem>>, vector<8x1xf32>,
    } else {
    }
    return
  }
  func.func @transform_0(%arg0: i32, %arg1: i32) -> (i32, i32) {
    %c0_i32 = arith.constant 0 : i32
    return %arg0, %arg1 : i32, i32
  }
  func.func @transform_1(%arg0: i32, %arg1: i32) -> (i32, i32) {
    %c0_i32 = arith.constant 0 : i32
    %c0_i32_0 = arith.constant 0 : i32
    return %arg0, %c0_i32 : i32, i32
  }
  func.func @transform_2(%arg0: i32, %arg1: i32) -> (i32, i32) {
    %c0_i32 = arith.constant 0 : i32
    %c0_i32_0 = arith.constant 0 : i32
    return %arg0, %c0_i32 : i32, i32
  }
}

module attributes {stable_mosaic.version = 11 : i64} {
  func.func @_affine_kernel(%arg0: i32, %arg1: i32, %arg2: memref<8x256xf32, #tpu.memory_space<vmem>>, %arg3: memref<8x2xf32, #tpu.memory_space<vmem>>, %arg4: memref<8x256xf32, #tpu.memory_space<vmem>>) attributes {dimension_semantics = [#tpu.dimension_semantics<parallel>, #tpu.dimension_semantics<parallel>], iteration_bounds = array<i64: 4, 1>, scalar_prefetch = 0 : i64, scratch_operands = 0 : i64, tpu.core_type = #tpu.core_type<tc>, window_params = [{transform_indices = @transform_0, window_bounds = array<i64: 8, 256>}, {transform_indices = @transform_1, window_bounds = array<i64: 8, 2>}, {transform_indices = @transform_2, window_bounds = array<i64: 8, 256>}]} {
    %c0 = arith.constant 0 : index
    %c0_0 = arith.constant 0 : index
    %0 = vector.load %arg2[%c0, %c0_0] : memref<8x256xf32, #tpu.memory_space<vmem>>, vector<8x256xf32>
    %c0_1 = arith.constant 0 : index
    %c0_2 = arith.constant 0 : index
    %1 = vector.load %arg3[%c0_1, %c0_2] : memref<8x2xf32, #tpu.memory_space<vmem>>, vector<8x2xf32>
    %2 = vector.extract_strided_slice %1 {offsets = [0, 0], sizes = [8, 1], strides = [1, 1]} : vector<8x2xf32> to vector<8x1xf32>
    %3 = vector.extract_strided_slice %1 {offsets = [0, 1], sizes = [8, 1], strides = [1, 1]} : vector<8x2xf32> to vector<8x1xf32>
    %4 = vector.broadcast %2 : vector<8x1xf32> to vector<8x256xf32>
    %5 = arith.mulf %0, %4 : vector<8x256xf32>
    %6 = vector.broadcast %3 : vector<8x1xf32> to vector<8x256xf32>
    %7 = arith.addf %5, %6 : vector<8x256xf32>
    %c0_3 = arith.constant 0 : index
    %c0_4 = arith.constant 0 : index
    %8 = vector.load %arg4[%c0_3, %c0_4] : memref<8x256xf32, #tpu.memory_space<vmem>>, vector<8x256xf32>
    tpu.vector_store %arg4[%c0_3, %c0_4], %7 {strides = array<i32>} : memref<8x256xf32, #tpu.memory_space<vmem>>, vector<8x256xf32>,
    return
  }
  func.func @transform_0(%arg0: i32, %arg1: i32) -> (i32, i32) {
    %c0_i32 = arith.constant 0 : i32
    return %arg0, %arg1 : i32, i32
  }
  func.func @transform_1(%arg0: i32, %arg1: i32) -> (i32, i32) {
    %c0_i32 = arith.constant 0 : i32
    %c0_i32_0 = arith.constant 0 : i32
    return %arg0, %c0_i32 : i32, i32
  }
  func.func @transform_2(%arg0: i32, %arg1: i32) -> (i32, i32) {
    %c0_i32 = arith.constant 0 : i32
    return %arg0, %arg1 : i32, i32
  }
}

</mosaic_0001>

<llo_original>
// kernel: adain2d_pallas.3
$region0: #{adain2d_pallas.3}
  #allocation0 [shape = 'u32[]', space=smem, size = 0x4, offset = 0x4, fixed_abs, tag = 'smem constant byte address 0x4 - core index']
  #allocation1 [shape = 'u32[72,128]{1,0:T(1,128)}', space=vmem, size = 0x9000, scoped, tag = 'internal scratch']
  %s0 = inlined_call_operand.vmem [shape: f32[32,256], index: 0, kind: input, shape index: {}]
  %s1 = inlined_call_operand.vmem [shape: f32[32,2], index: 1, kind: input, shape index: {}]
  %s2 = inlined_call_operand.vmem [shape: f32[32,256], index: 2, kind: output, shape index: {}]
  %s3 = sld [smem:[#allocation0]]
  $region41: #{adain2d_pallas.3} parent=0
    _
  %s5 = ssub.s32 1, %s3
  %s6 = scalar_select 0, %s5, %s3
  loop: start=0, step=1, limit=6
  $region2: #{adain2d_pallas.3} parent=0 // loop_pre_header
    _
  $region3: #{adain2d_pallas.3} parent=0 // loop_header
    %s8 = sphi 0, %s12
    %p9 = scmp.ge.s32.totalorder %s8, 6
    %s15 = sphi 0, %s27
    %s16 = sphi 0, %s23
    %s17 = sphi 0, %s15
    %s18 = sphi 0, %s16
    %s19 = sphi 0, %s17
    %s20 = sphi 0, %s18
    %s32 = sphi 0, %s34
    %s35 = sphi 0, %s32
    %s36 = sphi 0, %s35
    %s52 = sphi 0, %s36
    %s58 = sphi 0, %s60
    %s61 = sphi 0, %s58
    %s62 = sphi 0, %s61
    %s78 = sphi 0, %s62
    %s86 = sphi 0, %s88
    %s89 = sphi 0, %s86
    %s90 = sphi 0, %s89
    %s106 = sphi 0, %s90
  $region4: #{adain2d_pallas.3} parent=0 // loop_header_branch
    %11 = sbr.rel (%p9) target = $region8
  $region5: #{adain2d_pallas.3} parent=0 // loop_body
    %s13 = ssub.s32 %s8, 1
    %s14 = ssub.s32 %s8, 2
    %s21 = sadd.s32 1, %s16
    %p22 = scmp.ge.s32.totalorder %s21, 1
    %s23 = scalar_select %p22, 0, %s21
    %s24 = sadd.s32 1, %s15
    %s25 = scalar_select %p22, %s24, %s15
    %p26 = scmp.ge.s32.totalorder %s25, 4
    %s27 = scalar_select %p26, 0, %s25
    %s28 = ssub.s32 %s15, %s27
    %s29 = ssub.s32 %s16, %s23
    %s30 = sor.u32 %s28, %s29
    %p31 = scmp.eq.s32.totalorder %s30, 0
    %s33 = sadd.s32 %s32, 1
    %s34 = scalar_select %p31, %s32, %s33
    %p37 = pneg %p31
    %p38 = scmp.eq.s32.totalorder %s8, 3
    %p39 = por %p37, %p38
    %p40 = scmp.ne.s32.totalorder %s32, %s35
    %p41 = scmp.eq.s32.totalorder %s8, 0
    %p42 = por %p40, %p41
    %p43 = scmp.ne.s32.totalorder %s32, %s35
    %p44 = scmp.eq.s32.totalorder %s13, 3
    %p45 = por %p43, %p44
    %p46 = scmp.ne.s32.totalorder %s35, %s36
    %p47 = scmp.eq.s32.totalorder %s13, 0
    %p48 = por %p46, %p47
    %p49 = scmp.ne.s32.totalorder %s35, %s36
    %p50 = scmp.eq.s32.totalorder %s14, 3
    %p51 = por %p49, %p50
    %p53 = scmp.ne.s32.totalorder %s36, %s52
    %p54 = scmp.eq.s32.totalorder %s14, 0
    %p55 = por %p53, %p54
    %s56 = ssub.s32 %s15, %s27
    %p57 = scmp.eq.s32.totalorder %s56, 0
    %s59 = sadd.s32 %s58, 1
    %s60 = scalar_select %p57, %s58, %s59
    %p63 = pneg %p57
    %p64 = scmp.eq.s32.totalorder %s8, 3
    %p65 = por %p63, %p64
    %p66 = scmp.ne.s32.totalorder %s58, %s61
    %p67 = scmp.eq.s32.totalorder %s8, 0
    %p68 = por %p66, %p67
    %p69 = scmp.ne.s32.totalorder %s58, %s61
    %p70 = scmp.eq.s32.totalorder %s13, 3
    %p71 = por %p69, %p70
    %p72 = scmp.ne.s32.totalorder %s61, %s62
    %p73 = scmp.eq.s32.totalorder %s13, 0
    %p74 = por %p72, %p73
    %p75 = scmp.ne.s32.totalorder %s61, %s62
    %p76 = scmp.eq.s32.totalorder %s14, 3
    %p77 = por %p75, %p76
    %p79 = scmp.ne.s32.totalorder %s62, %s78
    %p80 = scmp.eq.s32.totalorder %s14, 0
    %p81 = por %p79, %p80
    %s82 = ssub.s32 %s15, %s27
    %s83 = ssub.s32 %s16, %s23
    %s84 = sor.u32 %s82, %s83
    %p85 = scmp.eq.s32.totalorder %s84, 0
    %s87 = sadd.s32 %s86, 1
    %s88 = scalar_select %p85, %s86, %s87
    %p91 = pneg %p85
    %p92 = scmp.eq.s32.totalorder %s8, 3
    %p93 = por %p91, %p92
    %p94 = scmp.ne.s32.totalorder %s86, %s89
    %p95 = scmp.eq.s32.totalorder %s8, 0
    %p96 = por %p94, %p95
    %p97 = scmp.ne.s32.totalorder %s86, %s89
    %p98 = scmp.eq.s32.totalorder %s13, 3
    %p99 = por %p97, %p98
    %p100 = scmp.ne.s32.totalorder %s89, %s90
    %p101 = scmp.eq.s32.totalorder %s13, 0
    %p102 = por %p100, %p101
    %p103 = scmp.ne.s32.totalorder %s89, %s90
    %p104 = scmp.eq.s32.totalorder %s14, 3
    %p105 = por %p103, %p104
    %p107 = scmp.ne.s32.totalorder %s90, %s106
    %p108 = scmp.eq.s32.totalorder %s14, 0
    %p109 = por %p107, %p108
    %p110 = scmp.le.s32.totalorder 1, %s8
    %p111 = scmp.lt.s32.totalorder %s8, 5
    %p112 = pnand %p110, %p111
    %p113 = pneg %p112
    // Predicated region
    $region9: #{adain2d_pallas.3} parent=5 // pred_check
      _
    $region10: #{adain2d_pallas.3} parent=5 // pred_check_branch
      %115 = sbr.rel (%p112) target = $region12
    $region11: #{adain2d_pallas.3} parent=5 // pred_region
      %s116 = ssub.s32 %s8, 1
    $region12: #{adain2d_pallas.3} parent=5 // pred_fallthru
      _
    %p117 = scmp.lt.s32.totalorder %s8, 4
    // Predicated region
    $region13: #{adain2d_pallas.3} parent=5 // pred_check
      %p118 = pneg %p117
    $region14: #{adain2d_pallas.3} parent=5 // pred_check_branch
      %120 = sbr.rel (%p118) target = $region16
    $region15: #{adain2d_pallas.3} parent=5 // pred_region
      // Predicated region
      $region17: #{adain2d_pallas.3} parent=15 // pred_check
        %p121 = pneg %p42
      $region18: #{adain2d_pallas.3} parent=15 // pred_check_branch
        %123 = sbr.rel (%p121) target = $region20
      $region19: #{adain2d_pallas.3} parent=15 // pred_region
        %s124 = smul.u32 2, %s16
        %p125 = scmp.lt.s32.totalorder %s15, 3
        %s126 = scalar_select %p125, %s15, 3
        %p127 = scmp.lt.s32.totalorder %s124, 1
        %s128 = scalar_select %p127, %s124, 1
        %s129 = smul.addr %s126, 2
        %s130 = sadd.s32 %s128, %s129
        %s131 = smul.addr %s130, 8
        %s132 = scalar_lea.vmem %s0, %s131
        %s133 = smul.u32 2, %s16
      $region20: #{adain2d_pallas.3} parent=15 // pred_fallthru
        _
      // Predicated region
      $region21: #{adain2d_pallas.3} parent=15 // pred_check
        %p134 = pneg %p68
      $region22: #{adain2d_pallas.3} parent=15 // pred_check_branch
        %136 = sbr.rel (%p134) target = $region24
      $region23: #{adain2d_pallas.3} parent=15 // pred_region
        %p137 = scmp.lt.s32.totalorder %s15, 3
        %s138 = scalar_select %p137, %s15, 3
        %s139 = smul.addr %s138, 8
        %s140 = scalar_lea.vmem %s1, %s139
      $region24: #{adain2d_pallas.3} parent=15 // pred_fallthru
        _
    $region16: #{adain2d_pallas.3} parent=5 // pred_fallthru
      _
    %p141 = scmp.le.s32.totalorder 1, %s8
    %p142 = scmp.lt.s32.totalorder %s8, 5
    %p143 = pnand %p141, %p142
    %p144 = pneg %p143
    // Predicated region
    $region25: #{adain2d_pallas.3} parent=5 // pred_check
      _
    $region26: #{adain2d_pallas.3} parent=5 // pred_check_branch
      %146 = sbr.rel (%p143) target = $region28
    $region27: #{adain2d_pallas.3} parent=5 // pred_region
      %s147 = ssub.s32 %s8, 1
      %s148 = smul.u32 2, %s18
      %p149 = scmp.lt.s32.totalorder %s17, 3
      %s150 = scalar_select %p149, %s17, 3
      %p151 = scmp.lt.s32.totalorder %s148, 1
      %s152 = scalar_select %p151, %s148, 1
      %s153 = smul.addr %s150, 2
      %s154 = sadd.s32 %s152, %s153
      %s155 = smul.addr %s154, 8
      %s156 = scalar_lea.vmem %s0, %s155
      %p157 = pneg %p48
      %p158 = pneg %p45
      %p159 = scmp.lt.s32.totalorder %s17, 3
      %s160 = scalar_select %p159, %s17, 3
      %s161 = smul.addr %s160, 8
      %s162 = scalar_lea.vmem %s1, %s161
      %p163 = pneg %p74
      %p164 = pneg %p71
      %p165 = pneg %p102
      %p166 = pneg %p99
      %s167 = smul.u32 2, %s18
      %p168 = scmp.lt.s32.totalorder %s17, 3
      %s169 = scalar_select %p168, %s17, 3
      %p170 = scmp.lt.s32.totalorder %s167, 1
      %s171 = scalar_select %p170, %s167, 1
      %s172 = smul.addr %s169, 2
      %s173 = sadd.s32 %s171, %s172
      %s174 = smul.addr %s173, 8
      %s175 = scalar_lea.vmem %s2, %s174
      %s176 = smul.u32 2, %s18
      %p177 = scmp.lt.s32.totalorder %s17, 3
      %s178 = scalar_select %p177, %s17, 3
      %p179 = scmp.lt.s32.totalorder %s176, 1
      %s180 = scalar_select %p179, %s176, 1
      %s181 = smul.addr %s178, 2
      %s182 = sadd.s32 %s180, %s181
      %s183 = smul.addr %s182, 8
      %s184 = scalar_lea.vmem %s0, %s183
      %s185 = smul.u32 2, %s18
      %p186 = scmp.lt.s32.totalorder %s17, 3
      %s187 = scalar_select %p186, %s17, 3
      %s188 = smul.addr %s187, 8
      %s189 = scalar_lea.vmem %s1, %s188
      %s190 = smul.u32 2, %s18
      %p191 = scmp.lt.s32.totalorder %s17, 3
      %s192 = scalar_select %p191, %s17, 3
      %p193 = scmp.lt.s32.totalorder %s190, 1
      %s194 = scalar_select %p193, %s190, 1
      %s195 = smul.addr %s192, 2
      %s196 = sadd.s32 %s194, %s195
      %s197 = smul.addr %s196, 8
      %s198 = scalar_lea.vmem %s2, %s197
      %s199 = smul.u32 2, %s18
      %v200 = vld [vmem:[%s184] sm:$0xff]
      %v201 = vld [vmem:[%s184 + $0x8] sm:$0xff]
      %v202 = vld [vmem:[%s189] sm:$0xff]
      %204 = vset.pattern.permute.xlu0 0
      %205 = vperm.xlu0 %204, %v202
      %v206 = vpop.permute.xlu0 %205
      %v208 = vmul.f32 %v200, %v206
      %v209 = vmul.f32 %v201, %v206
      %210 = vset.pattern.permute.xlu0 1
      %211 = vperm.xlu0 %210, %v202
      %v212 = vpop.permute.xlu0 %211
      %v214 = vadd.f32 %v208, %v212
      %v215 = vadd.f32 %v209, %v212
      %216 = vst [vmem:[%s198] sm:$0xff] %v214
      %217 = vst [vmem:[%s198 + $0x8] sm:$0xff] %v215
      %s218 = smul.u32 2, %s18
      %p219 = scmp.lt.s32.totalorder %s17, 3
      %s220 = scalar_select %p219, %s17, 3
      %p221 = scmp.lt.s32.totalorder %s218, 1
      %s222 = scalar_select %p221, %s218, 1
      %s223 = smul.addr %s220, 2
      %s224 = sadd.s32 %s222, %s223
      %s225 = smul.addr %s224, 8
      %s226 = scalar_lea.vmem %s2, %s225
      // Predicated region
      $region29: #{adain2d_pallas.3} parent=27 // pred_check
        %p227 = pneg %p99
      $region30: #{adain2d_pallas.3} parent=27 // pred_check_branch
        %229 = sbr.rel (%p227) target = $region32
      $region31: #{adain2d_pallas.3} parent=27 // pred_region
        %s230 = smul.u32 2, %s18
      $region32: #{adain2d_pallas.3} parent=27 // pred_fallthru
        _
    $region28: #{adain2d_pallas.3} parent=5 // pred_fallthru
      _
    %p231 = scmp.le.s32.totalorder 2, %s8
    // Predicated region
    $region33: #{adain2d_pallas.3} parent=5 // pred_check
      %p232 = pneg %p231
    $region34: #{adain2d_pallas.3} parent=5 // pred_check_branch
      %234 = sbr.rel (%p232) target = $region36
    $region35: #{adain2d_pallas.3} parent=5 // pred_region
      %s235 = ssub.s32 %s8, 2
      // Predicated region
      $region37: #{adain2d_pallas.3} parent=35 // pred_check
        %p236 = pneg %p105
      $region38: #{adain2d_pallas.3} parent=35 // pred_check_branch
        %238 = sbr.rel (%p236) target = $region40
      $region39: #{adain2d_pallas.3} parent=35 // pred_region
        %s239 = smul.u32 2, %s20
        %p240 = scmp.lt.s32.totalorder %s19, 3
        %s241 = scalar_select %p240, %s19, 3
        %p242 = scmp.lt.s32.totalorder %s239, 1
        %s243 = scalar_select %p242, %s239, 1
        %s244 = smul.addr %s241, 2
        %s245 = sadd.s32 %s243, %s244
        %s246 = smul.addr %s245, 8
        %s247 = scalar_lea.vmem %s2, %s246
      $region40: #{adain2d_pallas.3} parent=35 // pred_fallthru
        _
    $region36: #{adain2d_pallas.3} parent=5 // pred_fallthru
      _
  $region6: #{adain2d_pallas.3} parent=0 // loop_footer
    %s12 = sadd.s32 1, %s8
  $region7: #{adain2d_pallas.3} parent=0 // loop_footer_branch
    %7 = sbr.rel target = $region3
  $region8: #{adain2d_pallas.3} parent=0 // loop_exit
    _

// kernel: adain2d_pallas.2
$region0: #{adain2d_pallas.2}
  #allocation0 [shape = 'u32[]', space=smem, size = 0x4, offset = 0x4, fixed_abs, tag = 'smem constant byte address 0x4 - core index']
  #allocation1 [shape = 'u32[72,128]{1,0:T(1,128)}', space=vmem, size = 0x9000, scoped, tag = 'internal scratch']
  #allocation2 [shape = 'f32[8,1]{1,0:T(8,128)}', space=vmem, size = 0x1000, scoped, tag = 'scratch operand']
  #allocation3 [shape = 'f32[8,1]{1,0:T(8,128)}', space=vmem, size = 0x1000, scoped, tag = 'scratch operand']
  %s0 = inlined_call_operand.vmem [shape: f32[32,256], index: 0, kind: input, shape index: {}]
  %s1 = inlined_call_operand.vmem [shape: f32[32,1], index: 1, kind: output, shape index: {0}]
  %s2 = inlined_call_operand.vmem [shape: f32[32,1], index: 2, kind: output, shape index: {1}]
  %3 = xla_tuple %s1, %s2
  %s4 = sld [smem:[#allocation0]]
  $region53: #{adain2d_pallas.2} parent=0
    _
  %s6 = ssub.s32 1, %s4
  %s7 = scalar_select 0, %s6, %s4
  loop: start=0, step=1, limit=6
  $region2: #{adain2d_pallas.2} parent=0 // loop_pre_header
    _
  $region3: #{adain2d_pallas.2} parent=0 // loop_header
    %s9 = sphi 0, %s13
    %p10 = scmp.ge.s32.totalorder %s9, 6
    %s16 = sphi 0, %s28
    %s17 = sphi 0, %s24
    %s18 = sphi 0, %s16
    %s19 = sphi 0, %s17
    %s20 = sphi 0, %s18
    %s21 = sphi 0, %s19
    %s33 = sphi 0, %s35
    %s36 = sphi 0, %s33
    %s37 = sphi 0, %s36
    %s53 = sphi 0, %s37
    %s59 = sphi 0, %s61
    %s62 = sphi 0, %s59
    %s63 = sphi 0, %s62
    %s79 = sphi 0, %s63
    %s85 = sphi 0, %s87
    %s88 = sphi 0, %s85
    %s89 = sphi 0, %s88
    %s105 = sphi 0, %s89
  $region4: #{adain2d_pallas.2} parent=0 // loop_header_branch
    %12 = sbr.rel (%p10) target = $region8
  $region5: #{adain2d_pallas.2} parent=0 // loop_body
    %s14 = ssub.s32 %s9, 1
    %s15 = ssub.s32 %s9, 2
    %s22 = sadd.s32 1, %s17
    %p23 = scmp.ge.s32.totalorder %s22, 1
    %s24 = scalar_select %p23, 0, %s22
    %s25 = sadd.s32 1, %s16
    %s26 = scalar_select %p23, %s25, %s16
    %p27 = scmp.ge.s32.totalorder %s26, 4
    %s28 = scalar_select %p27, 0, %s26
    %s29 = ssub.s32 %s16, %s28
    %s30 = ssub.s32 %s17, %s24
    %s31 = sor.u32 %s29, %s30
    %p32 = scmp.eq.s32.totalorder %s31, 0
    %s34 = sadd.s32 %s33, 1
    %s35 = scalar_select %p32, %s33, %s34
    %p38 = pneg %p32
    %p39 = scmp.eq.s32.totalorder %s9, 3
    %p40 = por %p38, %p39
    %p41 = scmp.ne.s32.totalorder %s33, %s36
    %p42 = scmp.eq.s32.totalorder %s9, 0
    %p43 = por %p41, %p42
    %p44 = scmp.ne.s32.totalorder %s33, %s36
    %p45 = scmp.eq.s32.totalorder %s14, 3
    %p46 = por %p44, %p45
    %p47 = scmp.ne.s32.totalorder %s36, %s37
    %p48 = scmp.eq.s32.totalorder %s14, 0
    %p49 = por %p47, %p48
    %p50 = scmp.ne.s32.totalorder %s36, %s37
    %p51 = scmp.eq.s32.totalorder %s15, 3
    %p52 = por %p50, %p51
    %p54 = scmp.ne.s32.totalorder %s37, %s53
    %p55 = scmp.eq.s32.totalorder %s15, 0
    %p56 = por %p54, %p55
    %s57 = ssub.s32 %s16, %s28
    %p58 = scmp.eq.s32.totalorder %s57, 0
    %s60 = sadd.s32 %s59, 1
    %s61 = scalar_select %p58, %s59, %s60
    %p64 = pneg %p58
    %p65 = scmp.eq.s32.totalorder %s9, 3
    %p66 = por %p64, %p65
    %p67 = scmp.ne.s32.totalorder %s59, %s62
    %p68 = scmp.eq.s32.totalorder %s9, 0
    %p69 = por %p67, %p68
    %p70 = scmp.ne.s32.totalorder %s59, %s62
    %p71 = scmp.eq.s32.totalorder %s14, 3
    %p72 = por %p70, %p71
    %p73 = scmp.ne.s32.totalorder %s62, %s63
    %p74 = scmp.eq.s32.totalorder %s14, 0
    %p75 = por %p73, %p74
    %p76 = scmp.ne.s32.totalorder %s62, %s63
    %p77 = scmp.eq.s32.totalorder %s15, 3
    %p78 = por %p76, %p77
    %p80 = scmp.ne.s32.totalorder %s63, %s79
    %p81 = scmp.eq.s32.totalorder %s15, 0
    %p82 = por %p80, %p81
    %s83 = ssub.s32 %s16, %s28
    %p84 = scmp.eq.s32.totalorder %s83, 0
    %s86 = sadd.s32 %s85, 1
    %s87 = scalar_select %p84, %s85, %s86
    %p90 = pneg %p84
    %p91 = scmp.eq.s32.totalorder %s9, 3
    %p92 = por %p90, %p91
    %p93 = scmp.ne.s32.totalorder %s85, %s88
    %p94 = scmp.eq.s32.totalorder %s9, 0
    %p95 = por %p93, %p94
    %p96 = scmp.ne.s32.totalorder %s85, %s88
    %p97 = scmp.eq.s32.totalorder %s14, 3
    %p98 = por %p96, %p97
    %p99 = scmp.ne.s32.totalorder %s88, %s89
    %p100 = scmp.eq.s32.totalorder %s14, 0
    %p101 = por %p99, %p100
    %p102 = scmp.ne.s32.totalorder %s88, %s89
    %p103 = scmp.eq.s32.totalorder %s15, 3
    %p104 = por %p102, %p103
    %p106 = scmp.ne.s32.totalorder %s89, %s105
    %p107 = scmp.eq.s32.totalorder %s15, 0
    %p108 = por %p106, %p107
    %p109 = scmp.le.s32.totalorder 1, %s9
    %p110 = scmp.lt.s32.totalorder %s9, 5
    %p111 = pnand %p109, %p110
    %p112 = pneg %p111
    // Predicated region
    $region9: #{adain2d_pallas.2} parent=5 // pred_check
      _
    $region10: #{adain2d_pallas.2} parent=5 // pred_check_branch
      %114 = sbr.rel (%p111) target = $region12
    $region11: #{adain2d_pallas.2} parent=5 // pred_region
      %s115 = ssub.s32 %s9, 1
    $region12: #{adain2d_pallas.2} parent=5 // pred_fallthru
      _
    %p116 = scmp.lt.s32.totalorder %s9, 4
    // Predicated region
    $region13: #{adain2d_pallas.2} parent=5 // pred_check
      %p117 = pneg %p116
    $region14: #{adain2d_pallas.2} parent=5 // pred_check_branch
      %119 = sbr.rel (%p117) target = $region16
    $region15: #{adain2d_pallas.2} parent=5 // pred_region
      // Predicated region
      $region17: #{adain2d_pallas.2} parent=15 // pred_check
        %p120 = pneg %p43
      $region18: #{adain2d_pallas.2} parent=15 // pred_check_branch
        %122 = sbr.rel (%p120) target = $region20
      $region19: #{adain2d_pallas.2} parent=15 // pred_region
        %s123 = smul.u32 2, %s17
        %p124 = scmp.lt.s32.totalorder %s16, 3
        %s125 = scalar_select %p124, %s16, 3
        %p126 = scmp.lt.s32.totalorder %s123, 1
        %s127 = scalar_select %p126, %s123, 1
        %s128 = smul.addr %s125, 2
        %s129 = sadd.s32 %s127, %s128
        %s130 = smul.addr %s129, 8
        %s131 = scalar_lea.vmem %s0, %s130
        %s132 = smul.u32 2, %s17
      $region20: #{adain2d_pallas.2} parent=15 // pred_fallthru
        _
    $region16: #{adain2d_pallas.2} parent=5 // pred_fallthru
      _
    %p133 = scmp.le.s32.totalorder 1, %s9
    %p134 = scmp.lt.s32.totalorder %s9, 5
    %p135 = pnand %p133, %p134
    %p136 = pneg %p135
    // Predicated region
    $region21: #{adain2d_pallas.2} parent=5 // pred_check
      _
    $region22: #{adain2d_pallas.2} parent=5 // pred_check_branch
      %138 = sbr.rel (%p135) target = $region24
    $region23: #{adain2d_pallas.2} parent=5 // pred_region
      %s139 = ssub.s32 %s9, 1
      %s140 = smul.u32 2, %s19
      %p141 = scmp.lt.s32.totalorder %s18, 3
      %s142 = scalar_select %p141, %s18, 3
      %p143 = scmp.lt.s32.totalorder %s140, 1
      %s144 = scalar_select %p143, %s140, 1
      %s145 = smul.addr %s142, 2
      %s146 = sadd.s32 %s144, %s145
      %s147 = smul.addr %s146, 8
      %s148 = scalar_lea.vmem %s0, %s147
      %p149 = pneg %p49
      %p150 = pneg %p46
      %p151 = pneg %p75
      %p152 = pneg %p72
      %p153 = scmp.lt.s32.totalorder %s18, 3
      %s154 = scalar_select %p153, %s18, 3
      %s155 = smul.addr %s154, 8
      %s156 = scalar_lea.vmem %s1, %s155
      %p157 = pneg %p101
      %p158 = pneg %p98
      %p159 = scmp.lt.s32.totalorder %s18, 3
      %s160 = scalar_select %p159, %s18, 3
      %s161 = smul.addr %s160, 8
      %s162 = scalar_lea.vmem %s2, %s161
      %s163 = smul.u32 2, %s19
      %p164 = scmp.lt.s32.totalorder %s18, 3
      %s165 = scalar_select %p164, %s18, 3
      %p166 = scmp.lt.s32.totalorder %s163, 1
      %s167 = scalar_select %p166, %s163, 1
      %s168 = smul.addr %s165, 2
      %s169 = sadd.s32 %s167, %s168
      %s170 = smul.addr %s169, 8
      %s171 = scalar_lea.vmem %s0, %s170
      %s172 = smul.u32 2, %s19
      %p173 = scmp.lt.s32.totalorder %s18, 3
      %s174 = scalar_select %p173, %s18, 3
      %s175 = smul.addr %s174, 8
      %s176 = scalar_lea.vmem %s1, %s175
      %p177 = scmp.lt.s32.totalorder %s18, 3
      %s178 = scalar_select %p177, %s18, 3
      %s179 = smul.addr %s178, 8
      %s180 = scalar_lea.vmem %s2, %s179
      %p181 = scmp.eq.s32.totalorder %s19, 0
      // Predicated region
      $region25: #{adain2d_pallas.2} parent=23 // pred_check
        %p182 = pneg %p181
      $region26: #{adain2d_pallas.2} parent=23 // pred_check_branch
        %184 = sbr.rel (%p182) target = $region28
      $region27: #{adain2d_pallas.2} parent=23 // pred_region
        %vm185 = vcmask 7168
        %186 = vst.msk [vmem:[#allocation2] sm:$0xff] %vm185, 0.0
        %187 = vst.msk [vmem:[#allocation3] sm:$0xff] %vm185, 0.0
      $region28: #{adain2d_pallas.2} parent=23 // pred_fallthru
        _
      %v188 = vld [vmem:[%s171] sm:$0xff]
      %v189 = vld [vmem:[%s171 + $0x8] sm:$0xff]
      %s190 = smul.u32 %s19, 256
      %s191 = ssub.s32 256, %s190
      %v192 = vlaneseq
      %v193 = vand.u32 %v192, 127
      %v194 = vadd.s32 %v193, 128
      %v195 = vstv %s191
      %vm196 = vcmp.lt.s32.totalorder %v193, %v195
      %vm197 = vcmp.lt.s32.totalorder %v194, %v195
      %p198 = scmp.lt.s32.totalorder %s191, 256
      %s199 = scalar_select %p198, %s191, 256
      %s200 = scvt.s32.f32 %s199
      %v201 = vsel %vm196, %v188, 0.0
      %v202 = vsel %vm197, %v189, 0.0
      %v203 = vadd.f32 %v201, %v202
      %204 = vadd.xlane.f32.xlu0 %v203
      %v205 = vpop.xlane.xlu0 %204
      %v206 = vstv %s200
      %v207 = vrcp.pop %v206
      %v208 = vmul.f32 %v206, %v207
      %v209 = vsub.f32 1.0, %v208
      %v210 = vmul.f32 %v207, %v209
      %v211 = vadd.f32 %v207, %v210
      %vm212 = vweird.f32 %v206
      %vm213 = vweird.f32 %v207
      %vm214 = vmor %vm212, %vm213
      %v215 = vsel %vm214, %v207, %v211
      %v216 = vand.u32 2147483647, %v206
      %vm217 = vcmp.eq.f32.partialorder %v216, 8.507059e+37
      %v218 = vand.u32 %v206, 2147483648
      %v219 = vor.u32 1.1754944e-38, %v218
      %v220 = vsel %vm217, %v219, %v215
      %v221 = vmul.f32 %v205, %v220
      %v222 = vsub.f32 %v188, %v221
      %v223 = vsub.f32 %v189, %v221
      %v224 = vsel %vm196, %v222, 0.0
      %v225 = vsel %vm197, %v223, 0.0
      %v226 = vmul.f32 %v224, %v224
      %v227 = vmul.f32 %v225, %v225
      %v228 = vadd.f32 %v226, %v227
      %229 = vadd.xlane.f32.xlu0 %v228
      %v230 = vpop.xlane.xlu0 %229
      %s231 = scvt.s32.f32 %s190
      %s232 = sadd.f32 %s231, %s200
      %v233 = vstv %s232
      %v234 = vrcp.pop %v233
      %v235 = vmul.f32 %v233, %v234
      %v236 = vsub.f32 1.0, %v235
      %v237 = vmul.f32 %v234, %v236
      %v238 = vadd.f32 %v234, %v237
      %vm239 = vweird.f32 %v233
      %vm240 = vweird.f32 %v234
      %vm241 = vmor %vm239, %vm240
      %v242 = vsel %vm241, %v234, %v238
      %v243 = vand.u32 2147483647, %v233
      %vm244 = vcmp.eq.f32.partialorder %v243, 8.507059e+37
      %v245 = vand.u32 %v233, 2147483648
      %v246 = vor.u32 1.1754944e-38, %v245
      %v247 = vsel %vm244, %v246, %v242
      %s248 = vtos %v247
      %s249 = smul.f32 %s200, %s248
      %v250 = vld [vmem:[#allocation2] sm:$0xff]
      %v251 = vsub.f32 %v221, %v250
      %v252 = vstv %s249
      %v253 = vmul.f32 %v251, %v252
      %v254 = vadd.f32 %v250, %v253
      %vm255 = vcmask 7168
      %256 = vst.msk [vmem:[#allocation2] sm:$0xff] %vm255, %v254
      %v257 = vld [vmem:[#allocation3] sm:$0xff]
      %v258 = vadd.f32 %v257, %v230
      %v259 = vmul.f32 %v251, %v251
      %v260 = vstv %s231
      %v261 = vmul.f32 %v259, %v260
      %v262 = vmul.f32 %v261, %v252
      %v263 = vadd.f32 %v258, %v262
      %264 = vst.msk [vmem:[#allocation3] sm:$0xff] %vm255, %v263
      // Predicated region
      $region29: #{adain2d_pallas.2} parent=23 // pred_check
        %p265 = pneg %p181
      $region30: #{adain2d_pallas.2} parent=23 // pred_check_branch
        %267 = sbr.rel (%p265) target = $region32
      $region31: #{adain2d_pallas.2} parent=23 // pred_region
        %v268 = vld [vmem:[#allocation2] sm:$0xff]
        %269 = vst.msk [vmem:[%s176] sm:$0xff] %vm255, %v268
        %v270 = vld [vmem:[#allocation3] sm:$0xff]
        %v271 = vmul.f32 %v270, 0.003921569
        %v272 = vadd.f32 %v271, 1e-05
        %v273 = vrsqrt.pop %v272
        %v274 = vmul.f32 %v273, %v272
        %v275 = vmul.f32 %v274, %v273
        %v276 = vmul.f32 0.5, %v275
        %v277 = vsub.f32 1.5, %v276
        %v278 = vmul.f32 %v273, %v277
        %v279 = vmul.f32 %v272, %v278
        %vm280 = vcmp.eq.f32.partialorder %v272, inf
        %v281 = vsel %vm280, %v272, %v279
        %vm282 = vcmp.eq.f32.partialorder %v272, 0.0
        %v283 = vand.u32 %v272, 2147483648
        %v284 = vsel %vm282, %v283, %v281
        %285 = vst.msk [vmem:[%s180] sm:$0xff] %vm255, %v284
      $region32: #{adain2d_pallas.2} parent=23 // pred_fallthru
        _
      %p286 = scmp.lt.s32.totalorder %s18, 3
      %s287 = scalar_select %p286, %s18, 3
      %s288 = smul.addr %s287, 8
      %s289 = scalar_lea.vmem %s1, %s288
      %p290 = scmp.lt.s32.totalorder %s18, 3
      %s291 = scalar_select %p290, %s18, 3
      %s292 = smul.addr %s291, 8
      %s293 = scalar_lea.vmem %s2, %s292
      // Predicated region
      $region33: #{adain2d_pallas.2} parent=23 // pred_check
        %p294 = pneg %p72
      $region34: #{adain2d_pallas.2} parent=23 // pred_check_branch
        %296 = sbr.rel (%p294) target = $region36
      $region35: #{adain2d_pallas.2} parent=23 // pred_region
        _
      $region36: #{adain2d_pallas.2} parent=23 // pred_fallthru
        _
      // Predicated region
      $region37: #{adain2d_pallas.2} parent=23 // pred_check
        %p297 = pneg %p98
      $region38: #{adain2d_pallas.2} parent=23 // pred_check_branch
        %299 = sbr.rel (%p297) target = $region40
      $region39: #{adain2d_pallas.2} parent=23 // pred_region
        _
      $region40: #{adain2d_pallas.2} parent=23 // pred_fallthru
        _
    $region24: #{adain2d_pallas.2} parent=5 // pred_fallthru
      _
    %p300 = scmp.le.s32.totalorder 2, %s9
    // Predicated region
    $region41: #{adain2d_pallas.2} parent=5 // pred_check
      %p301 = pneg %p300
    $region42: #{adain2d_pallas.2} parent=5 // pred_check_branch
      %303 = sbr.rel (%p301) target = $region44
    $region43: #{adain2d_pallas.2} parent=5 // pred_region
      %s304 = ssub.s32 %s9, 2
      // Predicated region
      $region45: #{adain2d_pallas.2} parent=43 // pred_check
        %p305 = pneg %p78
      $region46: #{adain2d_pallas.2} parent=43 // pred_check_branch
        %307 = sbr.rel (%p305) target = $region48
      $region47: #{adain2d_pallas.2} parent=43 // pred_region
        %p308 = scmp.lt.s32.totalorder %s20, 3
        %s309 = scalar_select %p308, %s20, 3
        %s310 = smul.addr %s309, 8
        %s311 = scalar_lea.vmem %s1, %s310
      $region48: #{adain2d_pallas.2} parent=43 // pred_fallthru
        _
      // Predicated region
      $region49: #{adain2d_pallas.2} parent=43 // pred_check
        %p312 = pneg %p104
      $region50: #{adain2d_pallas.2} parent=43 // pred_check_branch
        %314 = sbr.rel (%p312) target = $region52
      $region51: #{adain2d_pallas.2} parent=43 // pred_region
        %p315 = scmp.lt.s32.totalorder %s20, 3
        %s316 = scalar_select %p315, %s20, 3
        %s317 = smul.addr %s316, 8
        %s318 = scalar_lea.vmem %s2, %s317
      $region52: #{adain2d_pallas.2} parent=43 // pred_fallthru
        _
    $region44: #{adain2d_pallas.2} parent=5 // pred_fallthru
      _
  $region6: #{adain2d_pallas.2} parent=0 // loop_footer
    %s13 = sadd.s32 1, %s9
  $region7: #{adain2d_pallas.2} parent=0 // loop_footer_branch
    %8 = sbr.rel target = $region3
  $region8: #{adain2d_pallas.2} parent=0 // loop_exit
    _

</llo_original>
